<compile_context>
chip_gen: v6e
topology: v6e:2x2x1
jax: 0.10.0
libtpu: 0.0.40
codegen_flags: <defaults>
</compile_context>

<pallas_src>
import jax
import jax.numpy as jnp
from jax import lax
from jax.experimental import pallas as pl
from jax.experimental.pallas import tpu as pltpu

# ---- problem sizes (small, consistent with the module defaults) -------------
B, N = 2, 8                      # graphs per batch, nodes per graph
BN = B * N
IN_DIM, POS_DIM = 4, 2           # input_dim, pos_enc_size
HID, OUT_DIM = 32, 6             # hidden_dim, output_dim
N_HEADS, HEAD_DIM, FF_DIM = 2, 16, 256
DEPTH = 8
LN_EPS = 1e-5
NEG_INF = -1e30                  # stands in for float('inf') mask fill (finite for TPU)
OUT_PAD = 128                    # lane-dense padded output width (sliced to OUT_DIM outside)
OUT_ROWS = 8                     # sublane-dense padded output rows (sliced to B outside)

# ---- packed parameter slab layout (row offsets; weight blocks 8-row aligned) -
R_WPREPP = 0                     # (IN_DIM+POS_DIM, HID)  stacked [w_pre; w_pp]
R_BPREPP = 6                     # (1, HID)  b_pre + b_pp (pre-summed)
R_BAO = 7                        # (1, HID)
R_BIN = 8                        # (1, 3*HID)
R_G1 = 9                         # (1, HID)
R_BE1 = 10                       # (1, HID)
R_G2 = 11                        # (1, HID)
R_BE2 = 12                       # (1, HID)
R_BF1 = 13                       # (1, FF_DIM)
R_BF2 = 14                       # (1, HID)
R_BPOST = 15                     # (1, OUT_PAD) zero-padded beyond OUT_DIM
R_WIN = 16                       # (HID, 3*HID)
R_WAO = 48                       # (HID, HID)
R_WF1 = 80                       # (HID, FF_DIM)
R_WF2T = 112                     # (HID, FF_DIM)   w_f2 stored TRANSPOSED
R_WPOST = 144                    # (HID, OUT_PAD)  zero-padded beyond OUT_DIM
SLAB_ROWS = R_WPOST + HID        # 176 (multiple of 8)
SLAB_COLS = 256

# ---- packed activation slab layout -------------------------------------------
A_FEATPE = 0                     # rows 0..BN-1,        cols 0..IN_DIM+POS_DIM-1
A_MASK = BN                      # rows BN..2BN-1,      cols 0..BN-1
A_ISROOT = 2 * BN                # rows 2BN..2BN+7,     cols 0..BN-1 (rows >= B are zero)
ACT_ROWS = 2 * BN + OUT_ROWS     # 40 (multiple of 8)
ACT_COLS = 128


def _layernorm(x, gamma, beta):
    mu = jnp.mean(x, axis=-1, keepdims=True)
    var = jnp.mean((x - mu) ** 2, axis=-1, keepdims=True)
    return (x - mu) * lax.rsqrt(var + LN_EPS) * gamma + beta


def encoder_kernel(act_ref, slab_ref, out_ref):
    f32, bf16 = jnp.float32, jnp.bfloat16

    # ---- activations (single packed slab) ----
    featpe = act_ref[A_FEATPE:A_FEATPE + BN, :IN_DIM + POS_DIM]     # (BN, 6)
    mask = act_ref[A_MASK:A_MASK + BN, :BN]                         # (BN, BN) additive mask
    isroot = act_ref[A_ISROOT:A_ISROOT + OUT_ROWS, :BN]             # (8, BN) readout weights

    # ---- small parameters (f32) ----
    b_prepp = slab_ref[R_BPREPP:R_BPREPP + 1, :HID]
    b_ao = slab_ref[R_BAO:R_BAO + 1, :HID]
    b_in = slab_ref[R_BIN:R_BIN + 1, :3 * HID]
    g1 = slab_ref[R_G1:R_G1 + 1, :HID]
    be1 = slab_ref[R_BE1:R_BE1 + 1, :HID]
    g2 = slab_ref[R_G2:R_G2 + 1, :HID]
    be2 = slab_ref[R_BE2:R_BE2 + 1, :HID]
    b_f1 = slab_ref[R_BF1:R_BF1 + 1, :FF_DIM]
    b_f2 = slab_ref[R_BF2:R_BF2 + 1, :HID]
    b_post = slab_ref[R_BPOST:R_BPOST + 1, :OUT_PAD]

    # ---- weights (cast to bf16 MXU operands; accumulation stays f32) ----
    w_prepp = slab_ref[R_WPREPP:R_WPREPP + IN_DIM + POS_DIM, :HID].astype(bf16)
    w_in = slab_ref[R_WIN:R_WIN + HID, :3 * HID].astype(bf16)
    w_ao = slab_ref[R_WAO:R_WAO + HID, :HID].astype(bf16)
    w_f1 = slab_ref[R_WF1:R_WF1 + HID, :FF_DIM].astype(bf16)
    w_f2t = slab_ref[R_WF2T:R_WF2T + HID, :FF_DIM].astype(bf16)
    w_post = slab_ref[R_WPOST:R_WPOST + HID, :OUT_PAD].astype(bf16)

    # fused pre / pre_pos linear: concat(feat, PE) @ [w_pre; w_pp] + (b_pre+b_pp)
    h = jnp.dot(featpe.astype(bf16), w_prepp, preferred_element_type=f32) + b_prepp

    # --- multi-head self attention -------------------------------------------
    qkv = jnp.dot(h.astype(bf16), w_in, preferred_element_type=f32) + b_in   # (BN, 3*HID)
    scale = 1.0 / (HEAD_DIM ** 0.5)
    attn = None
    for hh in range(N_HEADS):
        lo = hh * HEAD_DIM
        q = qkv[:, lo:lo + HEAD_DIM]
        k = qkv[:, HID + lo:HID + lo + HEAD_DIM]
        v = qkv[:, 2 * HID + lo:2 * HID + lo + HEAD_DIM]
        # q @ k^T without materializing a transpose (transposed MXU operand)
        s = lax.dot_general(q.astype(bf16), k.astype(bf16),
                            (((1,), (1,)), ((), ())),
                            preferred_element_type=f32) * scale + mask
        m = jnp.max(s, axis=-1, keepdims=True)
        p = jnp.exp(s - m)
        # NOTE: self-loops guarantee every row has at least one unmasked entry.
        p = p / jnp.sum(p, axis=-1, keepdims=True)          # exact softmax division
        oh = jnp.dot(p.astype(bf16), v.astype(bf16), preferred_element_type=f32)
        # per-head out_proj on a row-split of w_ao (avoids cross-lane concat)
        proj = jnp.dot(oh.astype(bf16), w_ao[lo:lo + HEAD_DIM, :],
                       preferred_element_type=f32)
        attn = proj if attn is None else attn + proj
    attn = attn + b_ao
    # TODO(synk): dropout layers of nn.TransformerEncoderLayer omitted (eval-mode identity).

    # residual + norm1 (post-norm), all f32 element-wise
    x = _layernorm(h + attn, g1, be1)

    # feed-forward (relu) + residual + norm2; w_f2 consumed in transposed form
    ff = jnp.maximum(jnp.dot(x.astype(bf16), w_f1, preferred_element_type=f32) + b_f1, 0.0)
    ff = lax.dot_general(ff.astype(bf16), w_f2t, (((1,), (1,)), ((), ())),
                         preferred_element_type=f32) + b_f2
    y = _layernorm(x + ff, g2, be2)

    # weighted readout (dgl.sum_nodes with weight='is_root') + post linear
    hg = jnp.dot(isroot.astype(bf16), y.astype(bf16), preferred_element_type=f32)  # (8, HID)
    out_ref[...] = jnp.dot(hg.astype(bf16), w_post, preferred_element_type=f32) + b_post


def pack_params(p):
    """Pack ALL parameters into one (SLAB_ROWS, SLAB_COLS) f32 slab (single DMA)."""
    s = jnp.zeros((SLAB_ROWS, SLAB_COLS), jnp.float32)
    s = s.at[R_WPREPP:R_WPREPP + IN_DIM, :HID].set(p['w_pre'])
    s = s.at[R_WPREPP + IN_DIM:R_WPREPP + IN_DIM + POS_DIM, :HID].set(p['w_pp'])
    s = s.at[R_BPREPP, :HID].set(p['b_pre'][0] + p['b_pp'][0])     # pre-summed bias
    s = s.at[R_BAO, :HID].set(p['b_ao'][0])
    s = s.at[R_BIN, :3 * HID].set(p['b_in'][0])
    s = s.at[R_G1, :HID].set(p['g1'][0])
    s = s.at[R_BE1, :HID].set(p['be1'][0])
    s = s.at[R_G2, :HID].set(p['g2'][0])
    s = s.at[R_BE2, :HID].set(p['be2'][0])
    s = s.at[R_BF1, :FF_DIM].set(p['b_f1'][0])
    s = s.at[R_BF2, :HID].set(p['b_f2'][0])
    s = s.at[R_BPOST, :OUT_DIM].set(p['b_post'][0])                # zero-padded to OUT_PAD
    s = s.at[R_WIN:R_WIN + HID, :3 * HID].set(p['w_in'])
    s = s.at[R_WAO:R_WAO + HID, :HID].set(p['w_ao'])
    s = s.at[R_WF1:R_WF1 + HID, :FF_DIM].set(p['w_f1'])
    s = s.at[R_WF2T:R_WF2T + HID, :FF_DIM].set(p['w_f2'].T)        # stored transposed
    s = s.at[R_WPOST:R_WPOST + HID, :OUT_DIM].set(p['w_post'])     # zero-padded to OUT_PAD
    return s


def build_act_slab(feat, pe, mask, isroot):
    """Pack feat|PE, block-diagonal attention mask and padded is_root into one slab."""
    feat2 = feat.reshape(BN, IN_DIM)
    pe2 = pe.reshape(BN, POS_DIM)
    # block-diagonal additive mask: cross-graph pairs fully masked (matches dgl.batch)
    mask_bd = jnp.full((B, N, B, N), NEG_INF, jnp.float32)
    bidx = jnp.arange(B)
    mask_bd = mask_bd.at[bidx, :, bidx, :].set(mask)
    mask2 = mask_bd.reshape(BN, BN)

    act = jnp.zeros((ACT_ROWS, ACT_COLS), jnp.float32)
    act = act.at[A_FEATPE:A_FEATPE + BN, :IN_DIM].set(feat2)
    act = act.at[A_FEATPE:A_FEATPE + BN, IN_DIM:IN_DIM + POS_DIM].set(pe2)
    act = act.at[A_MASK:A_MASK + BN, :BN].set(mask2)
    for b in range(B):
        act = act.at[A_ISROOT + b, b * N:(b + 1) * N].set(isroot[b, 0])
    return act


def mat_power(a, p):
    """Batched A^p by repeated squaring (dgl.khop_adj equivalent)."""
    result = None
    base = a
    while True:
        if p & 1:
            result = base if result is None else jnp.einsum('bij,bjk->bik', result, base)
        p >>= 1
        if p == 0:
            break
        base = jnp.einsum('bij,bjk->bik', base, base)
    return result


@jax.jit
def transformer_encoder(feat, pe, adj, isroot, params):
    # khop_adj(g, depth) == A^depth; mask = 1 - khop, zero entries -> -inf.
    # Kept inside the SAME jit as the pallas_call (no extra XLA dispatches).
    khop = mat_power(adj, DEPTH)
    mask = jnp.where(khop == 0, NEG_INF, 1.0 - khop).astype(jnp.float32)

    act = build_act_slab(feat, pe, mask, isroot)
    slab = pack_params(params)

    out = pl.pallas_call(
        encoder_kernel,
        out_shape=jax.ShapeDtypeStruct((OUT_ROWS, OUT_PAD), jnp.float32),
        grid=(1,),
        in_specs=[pl.BlockSpec((ACT_ROWS, ACT_COLS), lambda i: (0, 0)),
                  pl.BlockSpec((SLAB_ROWS, SLAB_COLS), lambda i: (0, 0))],
        out_specs=pl.BlockSpec((OUT_ROWS, OUT_PAD), lambda i: (0, 0)),
        compiler_params=pltpu.CompilerParams(dimension_semantics=("arbitrary",)),
        cost_estimate=pl.CostEstimate(flops=770_000, transcendentals=600,
                                      bytes_accessed=205_000),
    )(act, slab)
    return out[:B, :OUT_DIM]


def init_params(key):
    ks = jax.random.split(key, 8)

    def lin(k, i, o):
        kw, kb = jax.random.split(k)
        return (jax.random.normal(kw, (i, o), jnp.float32) * 0.1,
                jax.random.normal(kb, (1, o), jnp.float32) * 0.1)

    p = {}
    p['w_pre'], p['b_pre'] = lin(ks[0], IN_DIM, HID)
    p['w_pp'], p['b_pp'] = lin(ks[1], POS_DIM, HID)
    p['w_in'], p['b_in'] = lin(ks[2], HID, 3 * HID)      # MHA in_proj (q|k|v stacked)
    p['w_ao'], p['b_ao'] = lin(ks[3], HID, HID)          # MHA out_proj
    p['g1'], p['be1'] = jnp.ones((1, HID), jnp.float32), jnp.zeros((1, HID), jnp.float32)
    p['g2'], p['be2'] = jnp.ones((1, HID), jnp.float32), jnp.zeros((1, HID), jnp.float32)
    p['w_f1'], p['b_f1'] = lin(ks[4], HID, FF_DIM)
    p['w_f2'], p['b_f2'] = lin(ks[5], FF_DIM, HID)
    p['w_post'], p['b_post'] = lin(ks[6], HID, OUT_DIM)
    return p


if __name__ == "__main__":
    key = jax.random.PRNGKey(0)
    k_feat, k_pe, k_adj, k_par = jax.random.split(key, 4)

    feat = jax.random.normal(k_feat, (B, N, IN_DIM), jnp.float32)
    pe = jax.random.normal(k_pe, (B, N, POS_DIM), jnp.float32)

    # random adjacency with self-loops (keeps every k-hop row non-empty)
    adj = (jax.random.uniform(k_adj, (B, N, N)) < 0.3).astype(jnp.float32)
    adj = jnp.maximum(adj, jnp.eye(N, dtype=jnp.float32)[None])

    # one root node (node 0) per graph
    isroot = jnp.zeros((B, 1, N), jnp.float32).at[:, 0, 0].set(1.0)

    params = init_params(k_par)

    out = transformer_encoder(feat, pe, adj, isroot, params)
    out = jax.block_until_ready(out)
    assert out.shape == (B, OUT_DIM)
    assert bool(jnp.all(jnp.isfinite(out)))
    print("KERNEL_OK")
</pallas_src>

<mosaic_0001>
module attributes {stable_mosaic.version = 11 : i64} {
  func.func @encoder_kernel(%arg0: i32, %arg1: memref<40x128xf32, #tpu.memory_space<vmem>>, %arg2: memref<176x256xf32, #tpu.memory_space<vmem>>, %arg3: memref<8x128xf32, #tpu.memory_space<vmem>>) attributes {dimension_semantics = [#tpu.dimension_semantics<arbitrary>], iteration_bounds = array<i64: 1>, scalar_prefetch = 0 : i64, scratch_operands = 0 : i64, tpu.core_type = #tpu.core_type<tc>, window_params = [{pipeline_mode = #tpu.pipeline_mode<synchronous>, transform_indices = @transform_0, window_bounds = array<i64: 40, 128>}, {pipeline_mode = #tpu.pipeline_mode<synchronous>, transform_indices = @transform_1, window_bounds = array<i64: 176, 256>}, {pipeline_mode = #tpu.pipeline_mode<synchronous>, transform_indices = @transform_2, window_bounds = array<i64: 8, 128>}]} {
    %c0 = arith.constant 0 : index
    %c0_0 = arith.constant 0 : index
    %0 = vector.load %arg1[%c0, %c0_0] : memref<40x128xf32, #tpu.memory_space<vmem>>, vector<16x6xf32>
    %c16 = arith.constant 16 : index
    %c0_1 = arith.constant 0 : index
    %1 = vector.load %arg1[%c16, %c0_1] : memref<40x128xf32, #tpu.memory_space<vmem>>, vector<16x16xf32>
    %c32 = arith.constant 32 : index
    %c0_2 = arith.constant 0 : index
    %2 = vector.load %arg1[%c32, %c0_2] : memref<40x128xf32, #tpu.memory_space<vmem>>, vector<8x16xf32>
    %c6 = arith.constant 6 : index
    %c0_3 = arith.constant 0 : index
    %3 = vector.load %arg2[%c6, %c0_3] : memref<176x256xf32, #tpu.memory_space<vmem>>, vector<1x32xf32>
    %c7 = arith.constant 7 : index
    %c0_4 = arith.constant 0 : index
    %4 = vector.load %arg2[%c7, %c0_4] : memref<176x256xf32, #tpu.memory_space<vmem>>, vector<1x32xf32>
    %c8 = arith.constant 8 : index
    %c0_5 = arith.constant 0 : index
    %5 = vector.load %arg2[%c8, %c0_5] : memref<176x256xf32, #tpu.memory_space<vmem>>, vector<1x96xf32>
    %c9 = arith.constant 9 : index
    %c0_6 = arith.constant 0 : index
    %6 = vector.load %arg2[%c9, %c0_6] : memref<176x256xf32, #tpu.memory_space<vmem>>, vector<1x32xf32>
    %c10 = arith.constant 10 : index
    %c0_7 = arith.constant 0 : index
    %7 = vector.load %arg2[%c10, %c0_7] : memref<176x256xf32, #tpu.memory_space<vmem>>, vector<1x32xf32>
    %c11 = arith.constant 11 : index
    %c0_8 = arith.constant 0 : index
    %8 = vector.load %arg2[%c11, %c0_8] : memref<176x256xf32, #tpu.memory_space<vmem>>, vector<1x32xf32>
    %c12 = arith.constant 12 : index
    %c0_9 = arith.constant 0 : index
    %9 = vector.load %arg2[%c12, %c0_9] : memref<176x256xf32, #tpu.memory_space<vmem>>, vector<1x32xf32>
    %c13 = arith.constant 13 : index
    %c0_10 = arith.constant 0 : index
    %10 = vector.load %arg2[%c13, %c0_10] : memref<176x256xf32, #tpu.memory_space<vmem>>, vector<1x256xf32>
    %c14 = arith.constant 14 : index
    %c0_11 = arith.constant 0 : index
    %11 = vector.load %arg2[%c14, %c0_11] : memref<176x256xf32, #tpu.memory_space<vmem>>, vector<1x32xf32>
    %c15 = arith.constant 15 : index
    %c0_12 = arith.constant 0 : index
    %12 = vector.load %arg2[%c15, %c0_12] : memref<176x256xf32, #tpu.memory_space<vmem>>, vector<1x128xf32>
    %c0_13 = arith.constant 0 : index
    %c0_14 = arith.constant 0 : index
    %13 = vector.load %arg2[%c0_13, %c0_14] : memref<176x256xf32, #tpu.memory_space<vmem>>, vector<6x32xf32>
    %14 = arith.truncf %13 : vector<6x32xf32> to vector<6x32xbf16>
    %c16_15 = arith.constant 16 : index
    %c0_16 = arith.constant 0 : index
    %15 = vector.load %arg2[%c16_15, %c0_16] : memref<176x256xf32, #tpu.memory_space<vmem>>, vector<32x96xf32>
    %16 = arith.truncf %15 : vector<32x96xf32> to vector<32x96xbf16>
    %c48 = arith.constant 48 : index
    %c0_17 = arith.constant 0 : index
    %17 = vector.load %arg2[%c48, %c0_17] : memref<176x256xf32, #tpu.memory_space<vmem>>, vector<32x32xf32>
    %18 = arith.truncf %17 : vector<32x32xf32> to vector<32x32xbf16>
    %c80 = arith.constant 80 : index
    %c0_18 = arith.constant 0 : index
    %19 = vector.load %arg2[%c80, %c0_18] : memref<176x256xf32, #tpu.memory_space<vmem>>, vector<32x256xf32>
    %20 = arith.truncf %19 : vector<32x256xf32> to vector<32x256xbf16>
    %c112 = arith.constant 112 : index
    %c0_19 = arith.constant 0 : index
    %21 = vector.load %arg2[%c112, %c0_19] : memref<176x256xf32, #tpu.memory_space<vmem>>, vector<32x256xf32>
    %22 = arith.truncf %21 : vector<32x256xf32> to vector<32x256xbf16>
    %c144 = arith.constant 144 : index
    %c0_20 = arith.constant 0 : index
    %23 = vector.load %arg2[%c144, %c0_20] : memref<176x256xf32, #tpu.memory_space<vmem>>, vector<32x128xf32>
    %24 = arith.truncf %23 : vector<32x128xf32> to vector<32x128xbf16>
    %25 = arith.truncf %0 : vector<16x6xf32> to vector<16x6xbf16>
    %cst = arith.constant dense<0.000000e+00> : vector<16x32xf32>
    %26 = tpu.matmul %25, %14, %cst {dimension_numbers = #tpu.dot_dimension_numbers<[1], [0], [0], [1], [0, 0, 1, 1], [], []>} : vector<16x6xbf16>, vector<6x32xbf16>, vector<16x32xf32> -> vector<16x32xf32>
    %27 = vector.broadcast %3 : vector<1x32xf32> to vector<16x32xf32>
    %28 = arith.addf %26, %27 : vector<16x32xf32>
    %29 = arith.truncf %28 : vector<16x32xf32> to vector<16x32xbf16>
    %cst_21 = arith.constant dense<0.000000e+00> : vector<16x96xf32>
    %30 = tpu.matmul %29, %16, %cst_21 {dimension_numbers = #tpu.dot_dimension_numbers<[1], [0], [0], [1], [0, 0, 1, 1], [], []>} : vector<16x32xbf16>, vector<32x96xbf16>, vector<16x96xf32> -> vector<16x96xf32>
    %31 = vector.broadcast %5 : vector<1x96xf32> to vector<16x96xf32>
    %32 = arith.addf %30, %31 : vector<16x96xf32>
    %33 = vector.extract_strided_slice %32 {offsets = [0, 0], sizes = [16, 16], strides = [1, 1]} : vector<16x96xf32> to vector<16x16xf32>
    %34 = vector.extract_strided_slice %32 {offsets = [0, 32], sizes = [16, 16], strides = [1, 1]} : vector<16x96xf32> to vector<16x16xf32>
    %35 = vector.extract_strided_slice %32 {offsets = [0, 64], sizes = [16, 16], strides = [1, 1]} : vector<16x96xf32> to vector<16x16xf32>
    %36 = arith.truncf %33 : vector<16x16xf32> to vector<16x16xbf16>
    %37 = arith.truncf %34 : vector<16x16xf32> to vector<16x16xbf16>
    %cst_22 = arith.constant dense<0.000000e+00> : vector<16x16xf32>
    %38 = tpu.matmul %36, %37, %cst_22 {dimension_numbers = #tpu.dot_dimension_numbers<[1], [1], [0], [0], [0, 0, 1, 0], [], []>} : vector<16x16xbf16>, vector<16x16xbf16>, vector<16x16xf32> -> vector<16x16xf32>
    %cst_23 = arith.constant 2.500000e-01 : f32
    %39 = vector.broadcast %cst_23 : f32 to vector<16x16xf32>
    %40 = arith.mulf %38, %39 : vector<16x16xf32>
    %41 = arith.addf %40, %1 : vector<16x16xf32>
    %cst_24 = arith.constant dense<0xFF800000> : vector<16xf32>
    %42 = vector.multi_reduction <maximumf>, %41, %cst_24 [1] : vector<16x16xf32> to vector<16xf32>
    %43 = vector.shape_cast %42 : vector<16xf32> to vector<16x1xf32>
    %44 = vector.broadcast %43 : vector<16x1xf32> to vector<16x16xf32>
    %45 = arith.subf %41, %44 : vector<16x16xf32>
    %46 = math.exp %45 : vector<16x16xf32>
    %cst_25 = arith.constant dense<0.000000e+00> : vector<16xf32>
    %47 = vector.multi_reduction <add>, %46, %cst_25 [1] : vector<16x16xf32> to vector<16xf32>
    %48 = vector.shape_cast %47 : vector<16xf32> to vector<16x1xf32>
    %49 = vector.broadcast %48 : vector<16x1xf32> to vector<16x16xf32>
    %50 = arith.divf %46, %49 : vector<16x16xf32>
    %51 = arith.truncf %50 : vector<16x16xf32> to vector<16x16xbf16>
    %52 = arith.truncf %35 : vector<16x16xf32> to vector<16x16xbf16>
    %cst_26 = arith.constant dense<0.000000e+00> : vector<16x16xf32>
    %53 = tpu.matmul %51, %52, %cst_26 {dimension_numbers = #tpu.dot_dimension_numbers<[1], [0], [0], [1], [0, 0, 1, 1], [], []>} : vector<16x16xbf16>, vector<16x16xbf16>, vector<16x16xf32> -> vector<16x16xf32>
    %54 = arith.truncf %53 : vector<16x16xf32> to vector<16x16xbf16>
    %55 = vector.extract_strided_slice %18 {offsets = [0, 0], sizes = [16, 32], strides = [1, 1]} : vector<32x32xbf16> to vector<16x32xbf16>
    %cst_27 = arith.constant dense<0.000000e+00> : vector<16x32xf32>
    %56 = tpu.matmul %54, %55, %cst_27 {dimension_numbers = #tpu.dot_dimension_numbers<[1], [0], [0], [1], [0, 0, 1, 1], [], []>} : vector<16x16xbf16>, vector<16x32xbf16>, vector<16x32xf32> -> vector<16x32xf32>
    %57 = vector.extract_strided_slice %32 {offsets = [0, 16], sizes = [16, 16], strides = [1, 1]} : vector<16x96xf32> to vector<16x16xf32>
    %58 = vector.extract_strided_slice %32 {offsets = [0, 48], sizes = [16, 16], strides = [1, 1]} : vector<16x96xf32> to vector<16x16xf32>
    %59 = vector.extract_strided_slice %32 {offsets = [0, 80], sizes = [16, 16], strides = [1, 1]} : vector<16x96xf32> to vector<16x16xf32>
    %60 = arith.truncf %57 : vector<16x16xf32> to vector<16x16xbf16>
    %61 = arith.truncf %58 : vector<16x16xf32> to vector<16x16xbf16>
    %cst_28 = arith.constant dense<0.000000e+00> : vector<16x16xf32>
    %62 = tpu.matmul %60, %61, %cst_28 {dimension_numbers = #tpu.dot_dimension_numbers<[1], [1], [0], [0], [0, 0, 1, 0], [], []>} : vector<16x16xbf16>, vector<16x16xbf16>, vector<16x16xf32> -> vector<16x16xf32>
    %cst_29 = arith.constant 2.500000e-01 : f32
    %63 = vector.broadcast %cst_29 : f32 to vector<16x16xf32>
    %64 = arith.mulf %62, %63 : vector<16x16xf32>
    %65 = arith.addf %64, %1 : vector<16x16xf32>
    %cst_30 = arith.constant dense<0xFF800000> : vector<16xf32>
    %66 = vector.multi_reduction <maximumf>, %65, %cst_30 [1] : vector<16x16xf32> to vector<16xf32>
    %67 = vector.shape_cast %66 : vector<16xf32> to vector<16x1xf32>
    %68 = vector.broadcast %67 : vector<16x1xf32> to vector<16x16xf32>
    %69 = arith.subf %65, %68 : vector<16x16xf32>
    %70 = math.exp %69 : vector<16x16xf32>
    %cst_31 = arith.constant dense<0.000000e+00> : vector<16xf32>
    %71 = vector.multi_reduction <add>, %70, %cst_31 [1] : vector<16x16xf32> to vector<16xf32>
    %72 = vector.shape_cast %71 : vector<16xf32> to vector<16x1xf32>
    %73 = vector.broadcast %72 : vector<16x1xf32> to vector<16x16xf32>
    %74 = arith.divf %70, %73 : vector<16x16xf32>
    %75 = arith.truncf %74 : vector<16x16xf32> to vector<16x16xbf16>
    %76 = arith.truncf %59 : vector<16x16xf32> to vector<16x16xbf16>
    %cst_32 = arith.constant dense<0.000000e+00> : vector<16x16xf32>
    %77 = tpu.matmul %75, %76, %cst_32 {dimension_numbers = #tpu.dot_dimension_numbers<[1], [0], [0], [1], [0, 0, 1, 1], [], []>} : vector<16x16xbf16>, vector<16x16xbf16>, vector<16x16xf32> -> vector<16x16xf32>
    %78 = arith.truncf %77 : vector<16x16xf32> to vector<16x16xbf16>
    %79 = vector.extract_strided_slice %18 {offsets = [16, 0], sizes = [16, 32], strides = [1, 1]} : vector<32x32xbf16> to vector<16x32xbf16>
    %cst_33 = arith.constant dense<0.000000e+00> : vector<16x32xf32>
    %80 = tpu.matmul %78, %79, %cst_33 {dimension_numbers = #tpu.dot_dimension_numbers<[1], [0], [0], [1], [0, 0, 1, 1], [], []>} : vector<16x16xbf16>, vector<16x32xbf16>, vector<16x32xf32> -> vector<16x32xf32>
    %81 = arith.addf %56, %80 : vector<16x32xf32>
    %82 = vector.broadcast %4 : vector<1x32xf32> to vector<16x32xf32>
    %83 = arith.addf %81, %82 : vector<16x32xf32>
    %84 = arith.addf %28, %83 : vector<16x32xf32>
    %cst_34 = arith.constant dense<0.000000e+00> : vector<16xf32>
    %85 = vector.multi_reduction <add>, %84, %cst_34 [1] : vector<16x32xf32> to vector<16xf32>
    %86 = vector.shape_cast %85 : vector<16xf32> to vector<16x1xf32>
    %cst_35 = arith.constant 3.200000e+01 : f32
    %87 = vector.broadcast %cst_35 : f32 to vector<16x1xf32>
    %88 = arith.divf %86, %87 : vector<16x1xf32>
    %89 = vector.broadcast %88 : vector<16x1xf32> to vector<16x32xf32>
    %90 = arith.subf %84, %89 : vector<16x32xf32>
    %91 = arith.mulf %90, %90 : vector<16x32xf32>
    %cst_36 = arith.constant dense<0.000000e+00> : vector<16xf32>
    %92 = vector.multi_reduction <add>, %91, %cst_36 [1] : vector<16x32xf32> to vector<16xf32>
    %93 = vector.shape_cast %92 : vector<16xf32> to vector<16x1xf32>
    %cst_37 = arith.constant 3.200000e+01 : f32
    %94 = vector.broadcast %cst_37 : f32 to vector<16x1xf32>
    %95 = arith.divf %93, %94 : vector<16x1xf32>
    %96 = vector.broadcast %88 : vector<16x1xf32> to vector<16x32xf32>
    %97 = arith.subf %84, %96 : vector<16x32xf32>
    %cst_38 = arith.constant 9.99999974E-6 : f32
    %98 = vector.broadcast %cst_38 : f32 to vector<16x1xf32>
    %99 = arith.addf %95, %98 : vector<16x1xf32>
    %100 = math.rsqrt %99 : vector<16x1xf32>
    %101 = vector.broadcast %100 : vector<16x1xf32> to vector<16x32xf32>
    %102 = arith.mulf %97, %101 : vector<16x32xf32>
    %103 = vector.broadcast %6 : vector<1x32xf32> to vector<16x32xf32>
    %104 = arith.mulf %102, %103 : vector<16x32xf32>
    %105 = vector.broadcast %7 : vector<1x32xf32> to vector<16x32xf32>
    %106 = arith.addf %104, %105 : vector<16x32xf32>
    %107 = arith.truncf %106 : vector<16x32xf32> to vector<16x32xbf16>
    %cst_39 = arith.constant dense<0.000000e+00> : vector<16x256xf32>
    %108 = tpu.matmul %107, %20, %cst_39 {dimension_numbers = #tpu.dot_dimension_numbers<[1], [0], [0], [1], [0, 0, 1, 1], [], []>} : vector<16x32xbf16>, vector<32x256xbf16>, vector<16x256xf32> -> vector<16x256xf32>
    %109 = vector.broadcast %10 : vector<1x256xf32> to vector<16x256xf32>
    %110 = arith.addf %108, %109 : vector<16x256xf32>
    %cst_40 = arith.constant 0.000000e+00 : f32
    %111 = vector.broadcast %cst_40 : f32 to vector<16x256xf32>
    %112 = arith.maximumf %110, %111 : vector<16x256xf32>
    %113 = arith.truncf %112 : vector<16x256xf32> to vector<16x256xbf16>
    %cst_41 = arith.constant dense<0.000000e+00> : vector<16x32xf32>
    %114 = tpu.matmul %113, %22, %cst_41 {dimension_numbers = #tpu.dot_dimension_numbers<[1], [1], [0], [0], [0, 0, 1, 0], [], []>} : vector<16x256xbf16>, vector<32x256xbf16>, vector<16x32xf32> -> vector<16x32xf32>
    %115 = vector.broadcast %11 : vector<1x32xf32> to vector<16x32xf32>
    %116 = arith.addf %114, %115 : vector<16x32xf32>
    %117 = arith.addf %106, %116 : vector<16x32xf32>
    %cst_42 = arith.constant dense<0.000000e+00> : vector<16xf32>
    %118 = vector.multi_reduction <add>, %117, %cst_42 [1] : vector<16x32xf32> to vector<16xf32>
    %119 = vector.shape_cast %118 : vector<16xf32> to vector<16x1xf32>
    %cst_43 = arith.constant 3.200000e+01 : f32
    %120 = vector.broadcast %cst_43 : f32 to vector<16x1xf32>
    %121 = arith.divf %119, %120 : vector<16x1xf32>
    %122 = vector.broadcast %121 : vector<16x1xf32> to vector<16x32xf32>
    %123 = arith.subf %117, %122 : vector<16x32xf32>
    %124 = arith.mulf %123, %123 : vector<16x32xf32>
    %cst_44 = arith.constant dense<0.000000e+00> : vector<16xf32>
    %125 = vector.multi_reduction <add>, %124, %cst_44 [1] : vector<16x32xf32> to vector<16xf32>
    %126 = vector.shape_cast %125 : vector<16xf32> to vector<16x1xf32>
    %cst_45 = arith.constant 3.200000e+01 : f32
    %127 = vector.broadcast %cst_45 : f32 to vector<16x1xf32>
    %128 = arith.divf %126, %127 : vector<16x1xf32>
    %129 = vector.broadcast %121 : vector<16x1xf32> to vector<16x32xf32>
    %130 = arith.subf %117, %129 : vector<16x32xf32>
    %cst_46 = arith.constant 9.99999974E-6 : f32
    %131 = vector.broadcast %cst_46 : f32 to vector<16x1xf32>
    %132 = arith.addf %128, %131 : vector<16x1xf32>
    %133 = math.rsqrt %132 : vector<16x1xf32>
    %134 = vector.broadcast %133 : vector<16x1xf32> to vector<16x32xf32>
    %135 = arith.mulf %130, %134 : vector<16x32xf32>
    %136 = vector.broadcast %8 : vector<1x32xf32> to vector<16x32xf32>
    %137 = arith.mulf %135, %136 : vector<16x32xf32>
    %138 = vector.broadcast %9 : vector<1x32xf32> to vector<16x32xf32>
    %139 = arith.addf %137, %138 : vector<16x32xf32>
    %140 = arith.truncf %2 : vector<8x16xf32> to vector<8x16xbf16>
    %141 = arith.truncf %139 : vector<16x32xf32> to vector<16x32xbf16>
    %cst_47 = arith.constant dense<0.000000e+00> : vector<8x32xf32>
    %142 = tpu.matmul %140, %141, %cst_47 {dimension_numbers = #tpu.dot_dimension_numbers<[1], [0], [0], [1], [0, 0, 1, 1], [], []>} : vector<8x16xbf16>, vector<16x32xbf16>, vector<8x32xf32> -> vector<8x32xf32>
    %143 = arith.truncf %142 : vector<8x32xf32> to vector<8x32xbf16>
    %cst_48 = arith.constant dense<0.000000e+00> : vector<8x128xf32>
    %144 = tpu.matmul %143, %24, %cst_48 {dimension_numbers = #tpu.dot_dimension_numbers<[1], [0], [0], [1], [0, 0, 1, 1], [], []>} : vector<8x32xbf16>, vector<32x128xbf16>, vector<8x128xf32> -> vector<8x128xf32>
    %145 = vector.broadcast %12 : vector<1x128xf32> to vector<8x128xf32>
    %146 = arith.addf %144, %145 : vector<8x128xf32>
    %c0_49 = arith.constant 0 : index
    %c0_50 = arith.constant 0 : index
    %147 = vector.load %arg3[%c0_49, %c0_50] : memref<8x128xf32, #tpu.memory_space<vmem>>, vector<8x128xf32>
    tpu.vector_store %arg3[%c0_49, %c0_50], %146 {strides = array<i32>} : memref<8x128xf32, #tpu.memory_space<vmem>>, vector<8x128xf32>,
    return
  }
  func.func @transform_0(%arg0: i32) -> (i32, i32) {
    %c0_i32 = arith.constant 0 : i32
    %c0_i32_0 = arith.constant 0 : i32
    %c0_i32_1 = arith.constant 0 : i32
    return %c0_i32, %c0_i32_0 : i32, i32
  }
  func.func @transform_1(%arg0: i32) -> (i32, i32) {
    %c0_i32 = arith.constant 0 : i32
    %c0_i32_0 = arith.constant 0 : i32
    %c0_i32_1 = arith.constant 0 : i32
    return %c0_i32, %c0_i32_0 : i32, i32
  }
  func.func @transform_2(%arg0: i32) -> (i32, i32) {
    %c0_i32 = arith.constant 0 : i32
    %c0_i32_0 = arith.constant 0 : i32
    %c0_i32_1 = arith.constant 0 : i32
    return %c0_i32, %c0_i32_0 : i32, i32
  }
}

</mosaic_0001>

<llo_original>
// kernel: transformer_encoder.1
$region0: #{transformer_encoder.1}
  #allocation0 [shape = 'u32[]', space=smem, size = 0x4, offset = 0x4, fixed_abs, tag = 'smem constant byte address 0x4 - core index']
  #allocation1 [shape = 'u32[144,128]{1,0:T(1,128)}', space=vmem, size = 0x12000, scoped, tag = 'internal scratch']
  %s0 = inlined_call_operand.vmem [shape: f32[40,128], index: 0, kind: input, shape index: {}]
  %s1 = inlined_call_operand.vmem [shape: f32[176,256], index: 1, kind: input, shape index: {}]
  %s2 = inlined_call_operand.vmem [shape: f32[8,128], index: 2, kind: output, shape index: {}]
  %s3 = sld [smem:[#allocation0]]
  $region18: #{transformer_encoder.1} parent=0
    _
  %s5 = ssub.s32 1, %s3
  %s6 = scalar_select 0, %s5, %s3
  // Predicated region
  $region2: #{transformer_encoder.1} parent=0 // pred_check
    _
  $region3: #{transformer_encoder.1} parent=0 // pred_check_branch
    %8 = sbr.rel (0) target = $region5
  $region4: #{transformer_encoder.1} parent=0 // pred_region
    _
  $region5: #{transformer_encoder.1} parent=0 // pred_fallthru
    _
  // Predicated region
  $region6: #{transformer_encoder.1} parent=0 // pred_check
    _
  $region7: #{transformer_encoder.1} parent=0 // pred_check_branch
    %10 = sbr.rel (0) target = $region9
  $region8: #{transformer_encoder.1} parent=0 // pred_region
    _
  $region9: #{transformer_encoder.1} parent=0 // pred_fallthru
    _
  %v12 = vld [vmem:[%s0] sm:$0xff]
  %v13 = vld [vmem:[%s0 + $0x8] sm:$0xff]
  %v14 = vld [vmem:[%s0 + $0x10] sm:$0xff]
  %v15 = vld [vmem:[%s0 + $0x18] sm:$0xff]
  %v16 = vld [vmem:[%s0 + $0x20] sm:$0xff]
  %v17 = vld [vmem:[%s1 + $0x6] ss:$0 sm:$0xff]
  %v18 = vld [vmem:[%s1 + $0x7] ss:$0 sm:$0xff]
  %v19 = vld [vmem:[%s1 + $0x10] ss:$0 sm:$0xff]
  %v20 = vld [vmem:[%s1 + $0x11] ss:$0 sm:$0xff]
  %v21 = vld [vmem:[%s1 + $0x12] ss:$0 sm:$0xff]
  %v22 = vld [vmem:[%s1 + $0x13] ss:$0 sm:$0xff]
  %v23 = vld [vmem:[%s1 + $0x14] ss:$0 sm:$0xff]
  %s24 = scalar_lea.vmem %s1, 21
  %v25 = vld [vmem:[%s24] ss:$8 sm:$0x3]
  %v26 = vld [vmem:[%s1 + $0x16] ss:$0 sm:$0xff]
  %v27 = vld [vmem:[%s1 + $0x17] ss:$0 sm:$0xff]
  %v28 = vld [vmem:[%s1] sm:$0x3f]
  %v29 = vpack.c.bf16 %v28, %v28
  %v30 = vld [vmem:[%s1 + $0x20] sm:$0xff]
  %v31 = vld [vmem:[%s1 + $0x30] sm:$0xff]
  %v32 = vld [vmem:[%s1 + $0x40] sm:$0xff]
  %v33 = vld [vmem:[%s1 + $0x50] sm:$0xff]
  %v34 = vpack.c.bf16 %v31, %v30
  %v35 = vpack.c.bf16 %v33, %v32
  %v36 = vld [vmem:[%s1 + $0x60] sm:$0xff]
  %v37 = vld [vmem:[%s1 + $0x70] sm:$0xff]
  %v38 = vld [vmem:[%s1 + $0x80] sm:$0xff]
  %v39 = vld [vmem:[%s1 + $0x90] sm:$0xff]
  %v40 = vpack.c.bf16 %v37, %v36
  %v41 = vpack.c.bf16 %v39, %v38
  %v42 = vld [vmem:[%s1 + $0xa0] sm:$0xff]
  %v43 = vld [vmem:[%s1 + $0xa8] sm:$0xff]
  %v44 = vld [vmem:[%s1 + $0xb0] sm:$0xff]
  %v45 = vld [vmem:[%s1 + $0xb8] sm:$0xff]
  %v46 = vld [vmem:[%s1 + $0xc0] sm:$0xff]
  %v47 = vld [vmem:[%s1 + $0xc8] sm:$0xff]
  %v48 = vld [vmem:[%s1 + $0xd0] sm:$0xff]
  %v49 = vld [vmem:[%s1 + $0xd8] sm:$0xff]
  %v50 = vpack.c.bf16 %v44, %v42
  %v51 = vpack.c.bf16 %v45, %v43
  %v52 = vpack.c.bf16 %v48, %v46
  %v53 = vpack.c.bf16 %v49, %v47
  %v54 = vld [vmem:[%s1 + $0xe0] sm:$0xff]
  %v55 = vld [vmem:[%s1 + $0xe8] sm:$0xff]
  %v56 = vld [vmem:[%s1 + $0xf0] sm:$0xff]
  %v57 = vld [vmem:[%s1 + $0xf8] sm:$0xff]
  %v58 = vld [vmem:[%s1 + $0x100] sm:$0xff]
  %v59 = vld [vmem:[%s1 + $0x108] sm:$0xff]
  %v60 = vld [vmem:[%s1 + $0x110] sm:$0xff]
  %v61 = vld [vmem:[%s1 + $0x118] sm:$0xff]
  %v62 = vpack.c.bf16 %v56, %v54
  %v63 = vpack.c.bf16 %v57, %v55
  %v64 = vpack.c.bf16 %v60, %v58
  %v65 = vpack.c.bf16 %v61, %v59
  %v66 = vld [vmem:[%s1 + $0x120] sm:$0xff]
  %v67 = vld [vmem:[%s1 + $0x130] sm:$0xff]
  %v68 = vld [vmem:[%s1 + $0x140] sm:$0xff]
  %v69 = vld [vmem:[%s1 + $0x150] sm:$0xff]
  %v70 = vpack.c.bf16 %v67, %v66
  %v71 = vpack.c.bf16 %v69, %v68
  %v72 = vpack.c.bf16 %v13, %v12
  %vm73 = vcmask 48128
  %v75 = vsel %vm73, %v72, 0
  %vm77 = vcmask 1042432
  %v79 = vsel %vm77, %v29, 0
  %81 = vmatprep.subr.bf16.mxu0 0
  %82 = vmatpush1.bf16.msra.mxu0 0
  %83 = vmatprep.subr.bf16.mxu0 0
  %84 = vmatpush1.bf16.msra.mxu0 0
  %85 = vmatprep.subr.bf16.mxu0 0
  %86 = vmatpush1.bf16.msra.mxu0 0
  %87 = vmatprep.subr.bf16.mxu0 0
  %88 = vmatpush1.bf16.msra.mxu0 0
  %89 = vmatprep.subr.bf16.mxu0 0
  %90 = vmatpush1.bf16.msra.mxu0 0
  %91 = vmatprep.subr.bf16.mxu0 0
  %92 = vmatpush1.bf16.msra.mxu0 0
  %93 = vmatprep.subr.bf16.mxu0 0
  %94 = vmatpush1.bf16.msra.mxu0 0
  %95 = vmatprep.subr.bf16.mxu0 0
  %96 = vmatpush1.bf16.msra.mxu0 %v79
  %97 = vmatprep.subr.bf16.mxu0 0
  %98 = vmatpush2.bf16.msra.mxu0 0
  %99 = vmatprep.subr.bf16.mxu0 0
  %100 = vmatpush2.bf16.msra.mxu0 0
  %101 = vmatprep.subr.bf16.mxu0 0
  %102 = vmatpush2.bf16.msra.mxu0 0
  %103 = vmatprep.subr.bf16.mxu0 0
  %104 = vmatpush2.bf16.msra.mxu0 0
  %105 = vmatprep.subr.bf16.mxu0 0
  %106 = vmatpush2.bf16.msra.mxu0 0
  %107 = vmatprep.subr.bf16.mxu0 0
  %108 = vmatpush2.bf16.msra.mxu0 0
  %109 = vmatprep.subr.bf16.mxu0 0
  %110 = vmatpush2.bf16.msra.mxu0 0
  %111 = vmatprep.subr.bf16.mxu0 0
  %112 = vmatpush2.bf16.msra.mxu0 0
  %113 = vmatprep.mubr.bf16.mxu0 0
  %114 = vmatmul.mubr.bf16.gmra.mxu0 %v75
  %v115 = vpop.f32.mrf.mxu0
  %v116 = vadd.f32 %v17, %v115
  %v117 = vpop.f32.mrf.mxu0
  %v118 = vpop.f32.mrf.mxu0
  %v119 = vadd.f32 %v17, %v118
  %v120 = vpop.f32.mrf.mxu0
  %121 = vdwg.mxu0
  %v122 = vpack.c.bf16 %v119, %v116
  %vm123 = vcmask 261120
  %v125 = vsel %vm123, %v122, 0
  %127 = vmatprep.subr.bf16.mxu0 0
  %128 = vmatpush1.bf16.msra.mxu0 0
  %129 = vmatprep.subr.bf16.mxu0 0
  %130 = vmatpush1.bf16.msra.mxu0 0
  %131 = vmatprep.subr.bf16.mxu0 0
  %132 = vmatpush1.bf16.msra.mxu0 0
  %133 = vmatprep.subr.bf16.mxu0 0
  %134 = vmatpush1.bf16.msra.mxu0 0
  %135 = vmatprep.subr.bf16.mxu0 0
  %136 = vmatpush1.bf16.msra.mxu0 0
  %137 = vmatprep.subr.bf16.mxu0 0
  %138 = vmatpush1.bf16.msra.mxu0 0
  %139 = vmatprep.subr.bf16.mxu0 0
  %140 = vmatpush1.bf16.msra.mxu0 %v35
  %141 = vmatprep.subr.bf16.mxu0 0
  %142 = vmatpush1.bf16.msra.mxu0 %v34
  %143 = vmatprep.subr.bf16.mxu0 0
  %144 = vmatpush2.bf16.msra.mxu0 0
  %145 = vmatprep.subr.bf16.mxu0 0
  %146 = vmatpush2.bf16.msra.mxu0 0
  %147 = vmatprep.subr.bf16.mxu0 0
  %148 = vmatpush2.bf16.msra.mxu0 0
  %149 = vmatprep.subr.bf16.mxu0 0
  %150 = vmatpush2.bf16.msra.mxu0 0
  %151 = vmatprep.subr.bf16.mxu0 0
  %152 = vmatpush2.bf16.msra.mxu0 0
  %153 = vmatprep.subr.bf16.mxu0 0
  %154 = vmatpush2.bf16.msra.mxu0 0
  %155 = vmatprep.subr.bf16.mxu0 0
  %156 = vmatpush2.bf16.msra.mxu0 0
  %157 = vmatprep.subr.bf16.mxu0 0
  %158 = vmatpush2.bf16.msra.mxu0 0
  %159 = vmatprep.mubr.bf16.mxu0 0
  %160 = vmatmul.mubr.bf16.gmra.mxu0 %v125
  %v161 = vpop.f32.mrf.mxu0
  %v162 = vadd.f32 %v19, %v161
  %v163 = vpop.f32.mrf.mxu0
  %v164 = vpop.f32.mrf.mxu0
  %v165 = vadd.f32 %v19, %v164
  %v166 = vpop.f32.mrf.mxu0
  %167 = vdwg.mxu0
  %v168 = vpack.c.bf16 %v165, %v162
  %170 = vrot.lane.b32.xlu0 %v168, 96
  %v171 = vpop.permute.xlu0 %170
  %vm172 = vcmask 130048
  %v174 = vsel %vm172, %v168, 0
  %v177 = vsel %vm172, %v171, 0
  %179 = vmatprep.subr.bf16.mxu0 0
  %180 = vmatpush1.bf16.xpose.msra.mxu0 0
  %181 = vmatprep.subr.bf16.mxu0 0
  %182 = vmatpush1.bf16.xpose.msra.mxu0 0
  %183 = vmatprep.subr.bf16.mxu0 0
  %184 = vmatpush1.bf16.xpose.msra.mxu0 0
  %185 = vmatprep.subr.bf16.mxu0 0
  %186 = vmatpush1.bf16.xpose.msra.mxu0 0
  %187 = vmatprep.subr.bf16.mxu0 0
  %188 = vmatpush1.bf16.xpose.msra.mxu0 0
  %189 = vmatprep.subr.bf16.mxu0 0
  %190 = vmatpush1.bf16.xpose.msra.mxu0 0
  %191 = vmatprep.subr.bf16.mxu0 0
  %192 = vmatpush1.bf16.xpose.msra.mxu0 0
  %193 = vmatprep.subr.bf16.mxu0 0
  %194 = vmatpush1.bf16.xpose.msra.mxu0 %v177
  %195 = vmatprep.subr.bf16.mxu0 0
  %196 = vmatpush2.bf16.xpose.msra.mxu0 0
  %197 = vmatprep.subr.bf16.mxu0 0
  %198 = vmatpush2.bf16.xpose.msra.mxu0 0
  %199 = vmatprep.subr.bf16.mxu0 0
  %200 = vmatpush2.bf16.xpose.msra.mxu0 0
  %201 = vmatprep.subr.bf16.mxu0 0
  %202 = vmatpush2.bf16.xpose.msra.mxu0 0
  %203 = vmatprep.subr.bf16.mxu0 0
  %204 = vmatpush2.bf16.xpose.msra.mxu0 0
  %205 = vmatprep.subr.bf16.mxu0 0
  %206 = vmatpush2.bf16.xpose.msra.mxu0 0
  %207 = vmatprep.subr.bf16.mxu0 0
  %208 = vmatpush2.bf16.xpose.msra.mxu0 0
  %209 = vmatprep.subr.bf16.mxu0 0
  %210 = vmatpush2.bf16.xpose.msra.mxu0 0
  %211 = vmatprep.mubr.bf16.mxu0 0
  %212 = vmatmul.mubr.bf16.gmra.mxu0 %v174
  %v213 = vpop.f32.mrf.mxu0
  %v214 = vadd.f32 0.0, %v213
  %v215 = vpop.f32.mrf.mxu0
  %v216 = vpop.f32.mrf.mxu0
  %v217 = vadd.f32 0.0, %v216
  %v218 = vpop.f32.mrf.mxu0
  %219 = vdwg.mxu0
  %v220 = vmul.f32 %v214, 0.25
  %v221 = vmul.f32 %v217, 0.25
  %v222 = vadd.f32 %v220, %v14
  %v223 = vadd.f32 %v221, %v15
  %v224 = vsel %vm172, %v222, -inf
  %225 = vmax.xlane.f32.xlu0 %v224
  %v226 = vpop.xlane.xlu0 %225
  %v227 = vsel %vm172, %v223, -inf
  %228 = vmax.xlane.f32.xlu0 %v227
  %v229 = vpop.xlane.xlu0 %228
  %v230 = vsub.f32 %v222, %v226
  %v231 = vsub.f32 %v223, %v229
  %v232 = vmul.f32 %v230, 1.442695
  %v233 = vpow.pop %v232
  %v234 = vmul.f32 %v231, 1.442695
  %v235 = vpow.pop %v234
  %v236 = vsel %vm172, %v233, 0.0
  %237 = vadd.xlane.f32.xlu0 %v236
  %v238 = vpop.xlane.xlu0 %237
  %v239 = vsel %vm172, %v235, 0.0
  %240 = vadd.xlane.f32.xlu0 %v239
  %v241 = vpop.xlane.xlu0 %240
  %v242 = vrcp.pop %v238
  %v243 = vmul.f32 %v233, %v242
  %v244 = vrcp.pop %v241
  %v245 = vmul.f32 %v235, %v244
  %v246 = vpack.c.bf16 %v245, %v243
  %247 = vrot.lane.b32.xlu0 %v168, 64
  %v248 = vpop.permute.xlu0 %247
  %v251 = vsel %vm172, %v246, 0
  %253 = vmatprep.subr.bf16.mxu0 0
  %254 = vmatpush1.bf16.msra.mxu0 0
  %255 = vmatprep.subr.bf16.mxu0 0
  %256 = vmatpush1.bf16.msra.mxu0 0
  %257 = vmatprep.subr.bf16.mxu0 0
  %258 = vmatpush1.bf16.msra.mxu0 0
  %259 = vmatprep.subr.bf16.mxu0 0
  %260 = vmatpush1.bf16.msra.mxu0 0
  %261 = vmatprep.subr.bf16.mxu0 0
  %262 = vmatpush1.bf16.msra.mxu0 0
  %263 = vmatprep.subr.bf16.mxu0 0
  %264 = vmatpush1.bf16.msra.mxu0 0
  %265 = vmatprep.subr.bf16.mxu0 0
  %266 = vmatpush1.bf16.msra.mxu0 0
  %267 = vmatprep.subr.bf16.mxu0 0
  %268 = vmatpush1.bf16.msra.mxu0 %v248
  %269 = vmatprep.subr.bf16.mxu0 0
  %270 = vmatpush2.bf16.msra.mxu0 0
  %271 = vmatprep.subr.bf16.mxu0 0
  %272 = vmatpush2.bf16.msra.mxu0 0
  %273 = vmatprep.subr.bf16.mxu0 0
  %274 = vmatpush2.bf16.msra.mxu0 0
  %275 = vmatprep.subr.bf16.mxu0 0
  %276 = vmatpush2.bf16.msra.mxu0 0
  %277 = vmatprep.subr.bf16.mxu0 0
  %278 = vmatpush2.bf16.msra.mxu0 0
  %279 = vmatprep.subr.bf16.mxu0 0
  %280 = vmatpush2.bf16.msra.mxu0 0
  %281 = vmatprep.subr.bf16.mxu0 0
  %282 = vmatpush2.bf16.msra.mxu0 0
  %283 = vmatprep.subr.bf16.mxu0 0
  %284 = vmatpush2.bf16.msra.mxu0 0
  %285 = vmatprep.mubr.bf16.mxu0 0
  %286 = vmatmul.mubr.bf16.gmra.mxu0 %v251
  %v287 = vpop.f32.mrf.mxu0
  %v288 = vadd.f32 0.0, %v287
  %v289 = vpop.f32.mrf.mxu0
  %v290 = vpop.f32.mrf.mxu0
  %v291 = vadd.f32 0.0, %v290
  %v292 = vpop.f32.mrf.mxu0
  %293 = vdwg.mxu0
  %v294 = vpack.c.bf16 %v291, %v288
  %295 = vrot.lane.b32.xlu0 %v168, 112
  %v296 = vpop.permute.xlu0 %295
  %297 = vrot.lane.b32.xlu0 %v168, 80
  %v298 = vpop.permute.xlu0 %297
  %v300 = vsel %vm172, %v296, 0
  %v303 = vsel %vm172, %v298, 0
  %305 = vmatprep.subr.bf16.mxu0 0
  %306 = vmatpush1.bf16.xpose.msra.mxu0 0
  %307 = vmatprep.subr.bf16.mxu0 0
  %308 = vmatpush1.bf16.xpose.msra.mxu0 0
  %309 = vmatprep.subr.bf16.mxu0 0
  %310 = vmatpush1.bf16.xpose.msra.mxu0 0
  %311 = vmatprep.subr.bf16.mxu0 0
  %312 = vmatpush1.bf16.xpose.msra.mxu0 0
  %313 = vmatprep.subr.bf16.mxu0 0
  %314 = vmatpush1.bf16.xpose.msra.mxu0 0
  %315 = vmatprep.subr.bf16.mxu0 0
  %316 = vmatpush1.bf16.xpose.msra.mxu0 0
  %317 = vmatprep.subr.bf16.mxu0 0
  %318 = vmatpush1.bf16.xpose.msra.mxu0 0
  %319 = vmatprep.subr.bf16.mxu0 0
  %320 = vmatpush1.bf16.xpose.msra.mxu0 %v303
  %321 = vmatprep.subr.bf16.mxu0 0
  %322 = vmatpush2.bf16.xpose.msra.mxu0 0
  %323 = vmatprep.subr.bf16.mxu0 0
  %324 = vmatpush2.bf16.xpose.msra.mxu0 0
  %325 = vmatprep.subr.bf16.mxu0 0
  %326 = vmatpush2.bf16.xpose.msra.mxu0 0
  %327 = vmatprep.subr.bf16.mxu0 0
  %328 = vmatpush2.bf16.xpose.msra.mxu0 0
  %329 = vmatprep.subr.bf16.mxu0 0
  %330 = vmatpush2.bf16.xpose.msra.mxu0 0
  %331 = vmatprep.subr.bf16.mxu0 0
  %332 = vmatpush2.bf16.xpose.msra.mxu0 0
  %333 = vmatprep.subr.bf16.mxu0 0
  %334 = vmatpush2.bf16.xpose.msra.mxu0 0
  %335 = vmatprep.subr.bf16.mxu0 0
  %336 = vmatpush2.bf16.xpose.msra.mxu0 0
  %337 = vmatprep.mubr.bf16.mxu0 0
  %338 = vmatmul.mubr.bf16.gmra.mxu0 %v300
  %v339 = vpop.f32.mrf.mxu0
  %v340 = vadd.f32 0.0, %v339
  %v341 = vpop.f32.mrf.mxu0
  %v342 = vpop.f32.mrf.mxu0
  %v343 = vadd.f32 0.0, %v342
  %v344 = vpop.f32.mrf.mxu0
  %345 = vdwg.mxu0
  %v346 = vmul.f32 %v340, 0.25
  %v347 = vmul.f32 %v343, 0.25
  %v348 = vadd.f32 %v346, %v14
  %v349 = vadd.f32 %v347, %v15
  %v350 = vsel %vm172, %v348, -inf
  %351 = vmax.xlane.f32.xlu0 %v350
  %v352 = vpop.xlane.xlu0 %351
  %v353 = vsel %vm172, %v349, -inf
  %354 = vmax.xlane.f32.xlu0 %v353
  %v355 = vpop.xlane.xlu0 %354
  %v356 = vsub.f32 %v348, %v352
  %v357 = vsub.f32 %v349, %v355
  %v358 = vmul.f32 %v356, 1.442695
  %v359 = vpow.pop %v358
  %v360 = vmul.f32 %v357, 1.442695
  %v361 = vpow.pop %v360
  %v362 = vsel %vm172, %v359, 0.0
  %363 = vadd.xlane.f32.xlu0 %v362
  %v364 = vpop.xlane.xlu0 %363
  %v365 = vsel %vm172, %v361, 0.0
  %366 = vadd.xlane.f32.xlu0 %v365
  %v367 = vpop.xlane.xlu0 %366
  %v368 = vrcp.pop %v364
  %v369 = vmul.f32 %v359, %v368
  %v370 = vrcp.pop %v367
  %v371 = vmul.f32 %v361, %v370
  %v372 = vpack.c.bf16 %v371, %v369
  %373 = vrot.lane.b32.xlu0 %v168, 48
  %v374 = vpop.permute.xlu0 %373
  %v377 = vsel %vm172, %v372, 0
  %379 = vmatprep.subr.bf16.mxu0 0
  %380 = vmatpush1.bf16.msra.mxu0 0
  %381 = vmatprep.subr.bf16.mxu0 0
  %382 = vmatpush1.bf16.msra.mxu0 0
  %383 = vmatprep.subr.bf16.mxu0 0
  %384 = vmatpush1.bf16.msra.mxu0 0
  %385 = vmatprep.subr.bf16.mxu0 0
  %386 = vmatpush1.bf16.msra.mxu0 0
  %387 = vmatprep.subr.bf16.mxu0 0
  %388 = vmatpush1.bf16.msra.mxu0 0
  %389 = vmatprep.subr.bf16.mxu0 0
  %390 = vmatpush1.bf16.msra.mxu0 0
  %391 = vmatprep.subr.bf16.mxu0 0
  %392 = vmatpush1.bf16.msra.mxu0 0
  %393 = vmatprep.subr.bf16.mxu0 0
  %394 = vmatpush1.bf16.msra.mxu0 %v374
  %395 = vmatprep.subr.bf16.mxu0 0
  %396 = vmatpush2.bf16.msra.mxu0 0
  %397 = vmatprep.subr.bf16.mxu0 0
  %398 = vmatpush2.bf16.msra.mxu0 0
  %399 = vmatprep.subr.bf16.mxu0 0
  %400 = vmatpush2.bf16.msra.mxu0 0
  %401 = vmatprep.subr.bf16.mxu0 0
  %402 = vmatpush2.bf16.msra.mxu0 0
  %403 = vmatprep.subr.bf16.mxu0 0
  %404 = vmatpush2.bf16.msra.mxu0 0
  %405 = vmatprep.subr.bf16.mxu0 0
  %406 = vmatpush2.bf16.msra.mxu0 0
  %407 = vmatprep.subr.bf16.mxu0 0
  %408 = vmatpush2.bf16.msra.mxu0 0
  %409 = vmatprep.subr.bf16.mxu0 0
  %410 = vmatpush2.bf16.msra.mxu0 0
  %411 = vmatprep.mubr.bf16.mxu0 0
  %412 = vmatmul.mubr.bf16.gmra.mxu0 %v377
  %v413 = vpop.f32.mrf.mxu0
  %v414 = vadd.f32 0.0, %v413
  %v415 = vpop.f32.mrf.mxu0
  %v416 = vpop.f32.mrf.mxu0
  %v417 = vadd.f32 0.0, %v416
  %v418 = vpop.f32.mrf.mxu0
  %419 = vdwg.mxu0
  %v420 = vpack.c.bf16 %v417, %v414
  %v422 = vsel %vm172, %v420, 0
  %424 = vmatprep.subr.bf16.mxu0 0
  %425 = vmatpush1.bf16.msra.mxu0 0
  %426 = vmatprep.subr.bf16.mxu0 0
  %427 = vmatpush1.bf16.msra.mxu0 0
  %428 = vmatprep.subr.bf16.mxu0 0
  %429 = vmatpush1.bf16.msra.mxu0 0
  %430 = vmatprep.subr.bf16.mxu0 0
  %431 = vmatpush1.bf16.msra.mxu0 0
  %432 = vmatprep.subr.bf16.mxu0 0
  %433 = vmatpush1.bf16.msra.mxu0 0
  %434 = vmatprep.subr.bf16.mxu0 0
  %435 = vmatpush1.bf16.msra.mxu0 0
  %436 = vmatprep.subr.bf16.mxu0 0
  %437 = vmatpush1.bf16.msra.mxu0 0
  %438 = vmatprep.subr.bf16.mxu0 0
  %439 = vmatpush1.bf16.msra.mxu0 %v41
  %440 = vmatprep.subr.bf16.mxu0 0
  %441 = vmatpush2.bf16.msra.mxu0 0
  %442 = vmatprep.subr.bf16.mxu0 0
  %443 = vmatpush2.bf16.msra.mxu0 0
  %444 = vmatprep.subr.bf16.mxu0 0
  %445 = vmatpush2.bf16.msra.mxu0 0
  %446 = vmatprep.subr.bf16.mxu0 0
  %447 = vmatpush2.bf16.msra.mxu0 0
  %448 = vmatprep.subr.bf16.mxu0 0
  %449 = vmatpush2.bf16.msra.mxu0 0
  %450 = vmatprep.subr.bf16.mxu0 0
  %451 = vmatpush2.bf16.msra.mxu0 0
  %452 = vmatprep.subr.bf16.mxu0 0
  %453 = vmatpush2.bf16.msra.mxu0 0
  %454 = vmatprep.subr.bf16.mxu0 0
  %455 = vmatpush2.bf16.msra.mxu0 0
  %456 = vmatprep.mubr.bf16.mxu0 0
  %457 = vmatmul.mubr.bf16.gmra.mxu0 %v422
  %v458 = vpop.f32.mrf.mxu0
  %v459 = vadd.f32 0.0, %v458
  %v460 = vpop.f32.mrf.mxu0
  %v461 = vpop.f32.mrf.mxu0
  %v462 = vadd.f32 0.0, %v461
  %v463 = vpop.f32.mrf.mxu0
  %464 = vdwg.mxu0
  %v466 = vsel %vm172, %v294, 0
  %468 = vmatprep.subr.bf16.mxu0 0
  %469 = vmatpush1.bf16.msra.mxu0 0
  %470 = vmatprep.subr.bf16.mxu0 0
  %471 = vmatpush1.bf16.msra.mxu0 0
  %472 = vmatprep.subr.bf16.mxu0 0
  %473 = vmatpush1.bf16.msra.mxu0 0
  %474 = vmatprep.subr.bf16.mxu0 0
  %475 = vmatpush1.bf16.msra.mxu0 0
  %476 = vmatprep.subr.bf16.mxu0 0
  %477 = vmatpush1.bf16.msra.mxu0 0
  %478 = vmatprep.subr.bf16.mxu0 0
  %479 = vmatpush1.bf16.msra.mxu0 0
  %480 = vmatprep.subr.bf16.mxu0 0
  %481 = vmatpush1.bf16.msra.mxu0 0
  %482 = vmatprep.subr.bf16.mxu0 0
  %483 = vmatpush1.bf16.msra.mxu0 %v40
  %484 = vmatprep.subr.bf16.mxu0 0
  %485 = vmatpush2.bf16.msra.mxu0 0
  %486 = vmatprep.subr.bf16.mxu0 0
  %487 = vmatpush2.bf16.msra.mxu0 0
  %488 = vmatprep.subr.bf16.mxu0 0
  %489 = vmatpush2.bf16.msra.mxu0 0
  %490 = vmatprep.subr.bf16.mxu0 0
  %491 = vmatpush2.bf16.msra.mxu0 0
  %492 = vmatprep.subr.bf16.mxu0 0
  %493 = vmatpush2.bf16.msra.mxu0 0
  %494 = vmatprep.subr.bf16.mxu0 0
  %495 = vmatpush2.bf16.msra.mxu0 0
  %496 = vmatprep.subr.bf16.mxu0 0
  %497 = vmatpush2.bf16.msra.mxu0 0
  %498 = vmatprep.subr.bf16.mxu0 0
  %499 = vmatpush2.bf16.msra.mxu0 0
  %500 = vmatprep.mubr.bf16.mxu0 0
  %501 = vmatmul.mubr.bf16.gmra.mxu0 %v466
  %v502 = vpop.f32.mrf.mxu0
  %v503 = vadd.f32 %v459, %v502
  %v504 = vpop.f32.mrf.mxu0
  %v505 = vpop.f32.mrf.mxu0
  %v506 = vadd.f32 %v462, %v505
  %v507 = vpop.f32.mrf.mxu0
  %508 = vdwg.mxu0
  %v509 = vadd.f32 %v503, %v18
  %v510 = vadd.f32 %v506, %v18
  %v511 = vadd.f32 %v116, %v509
  %v512 = vadd.f32 %v119, %v510
  %v513 = vsel %vm123, %v511, 0.0
  %514 = vadd.xlane.f32.xlu0 %v513
  %v515 = vpop.xlane.xlu0 %514
  %v516 = vsel %vm123, %v512, 0.0
  %517 = vadd.xlane.f32.xlu0 %v516
  %v518 = vpop.xlane.xlu0 %517
  %v519 = vrcp.pop 32.0
  %v520 = vmul.f32 %v515, %v519
  %v521 = vmul.f32 %v518, %v519
  %v522 = vsub.f32 %v511, %v520
  %v523 = vsub.f32 %v512, %v521
  %v524 = vmul.f32 %v522, %v522
  %v525 = vmul.f32 %v523, %v523
  %v526 = vsel %vm123, %v524, 0.0
  %527 = vadd.xlane.f32.xlu0 %v526
  %v528 = vpop.xlane.xlu0 %527
  %v529 = vsel %vm123, %v525, 0.0
  %530 = vadd.xlane.f32.xlu0 %v529
  %v531 = vpop.xlane.xlu0 %530
  %v532 = vmul.f32 %v528, %v519
  %v533 = vmul.f32 %v531, %v519
  %v534 = vadd.f32 %v532, 1e-05
  %v535 = vadd.f32 %v533, 1e-05
  %v536 = vrsqrt.pop %v534
  %v537 = vrsqrt.pop %v535
  %v538 = vmul.f32 %v522, %v536
  %v539 = vmul.f32 %v523, %v537
  %v540 = vmul.f32 %v538, %v20
  %v541 = vmul.f32 %v539, %v20
  %v542 = vadd.f32 %v540, %v21
  %v543 = vadd.f32 %v541, %v21
  %v544 = vpack.c.bf16 %v543, %v542
  %v546 = vlaneseq
  %v547 = vshrl.u32 %v546, 7
  %v548 = vsub.s32 0, %v547
  %v549 = vrot.slane %v25, %v548
  %v550 = vlaneseq
  %v551 = vshrl.u32 %v550, 7
  %v552 = vsub.s32 1, %v551
  %v553 = vrot.slane %v25, %v552
  %v557 = vsel %vm123, %v544, 0
  %559 = vmatprep.subr.bf16.mxu0 0
  %560 = vmatpush1.bf16.msra.mxu0 0
  %561 = vmatprep.subr.bf16.mxu0 0
  %562 = vmatpush1.bf16.msra.mxu0 0
  %563 = vmatprep.subr.bf16.mxu0 0
  %564 = vmatpush1.bf16.msra.mxu0 0
  %565 = vmatprep.subr.bf16.mxu0 0
  %566 = vmatpush1.bf16.msra.mxu0 0
  %567 = vmatprep.subr.bf16.mxu0 0
  %568 = vmatpush1.bf16.msra.mxu0 0
  %569 = vmatprep.subr.bf16.mxu0 0
  %570 = vmatpush1.bf16.msra.mxu0 0
  %571 = vmatprep.subr.bf16.mxu0 %v53
  %572 = vmatpush1.bf16.msra.mxu0 %v52
  %573 = vmatprep.subr.bf16.mxu0 %v51
  %574 = vmatpush1.bf16.msra.mxu0 %v50
  %575 = vmatprep.subr.bf16.mxu0 0
  %576 = vmatpush2.bf16.msra.mxu0 0
  %577 = vmatprep.subr.bf16.mxu0 0
  %578 = vmatpush2.bf16.msra.mxu0 0
  %579 = vmatprep.subr.bf16.mxu0 0
  %580 = vmatpush2.bf16.msra.mxu0 0
  %581 = vmatprep.subr.bf16.mxu0 0
  %582 = vmatpush2.bf16.msra.mxu0 0
  %583 = vmatprep.subr.bf16.mxu0 0
  %584 = vmatpush2.bf16.msra.mxu0 0
  %585 = vmatprep.subr.bf16.mxu0 0
  %586 = vmatpush2.bf16.msra.mxu0 0
  %587 = vmatprep.subr.bf16.mxu0 0
  %588 = vmatpush2.bf16.msra.mxu0 0
  %589 = vmatprep.subr.bf16.mxu0 0
  %590 = vmatpush2.bf16.msra.mxu0 0
  %591 = vmatprep.mubr.bf16.mxu0 0
  %592 = vmatmul.mubr.bf16.gmra.mxu0 %v557
  %v593 = vpop.f32.mrf.mxu0
  %v594 = vadd.f32 %v549, %v593
  %v595 = vpop.f32.mrf.mxu0
  %v596 = vadd.f32 %v553, %v595
  %v597 = vpop.f32.mrf.mxu0
  %v598 = vadd.f32 %v549, %v597
  %v599 = vpop.f32.mrf.mxu0
  %v600 = vadd.f32 %v553, %v599
  %601 = vdwg.mxu0
  %v602 = vmax.f32 %v594, 0.0
  %v603 = vmax.f32 %v596, 0.0
  %v604 = vmax.f32 %v598, 0.0
  %v605 = vmax.f32 %v600, 0.0
  %v606 = vpack.c.bf16 %v604, %v602
  %v607 = vpack.c.bf16 %v605, %v603
  %608 = vmatprep.subr.bf16.mxu0 0
  %609 = vmatpush1.bf16.xpose.msra.mxu0 0
  %610 = vmatprep.subr.bf16.mxu0 0
  %611 = vmatpush1.bf16.xpose.msra.mxu0 0
  %612 = vmatprep.subr.bf16.mxu0 0
  %613 = vmatpush1.bf16.xpose.msra.mxu0 0
  %614 = vmatprep.subr.bf16.mxu0 0
  %615 = vmatpush1.bf16.xpose.msra.mxu0 0
  %616 = vmatprep.subr.bf16.mxu0 0
  %617 = vmatpush1.bf16.xpose.msra.mxu0 0
  %618 = vmatprep.subr.bf16.mxu0 0
  %619 = vmatpush1.bf16.xpose.msra.mxu0 0
  %620 = vmatprep.subr.bf16.mxu0 %v65
  %621 = vmatpush1.bf16.xpose.msra.mxu0 %v64
  %622 = vmatprep.subr.bf16.mxu0 %v63
  %623 = vmatpush1.bf16.xpose.msra.mxu0 %v62
  %624 = vmatprep.subr.bf16.mxu0 0
  %625 = vmatpush2.bf16.xpose.msra.mxu0 0
  %626 = vmatprep.subr.bf16.mxu0 0
  %627 = vmatpush2.bf16.xpose.msra.mxu0 0
  %628 = vmatprep.subr.bf16.mxu0 0
  %629 = vmatpush2.bf16.xpose.msra.mxu0 0
  %630 = vmatprep.subr.bf16.mxu0 0
  %631 = vmatpush2.bf16.xpose.msra.mxu0 0
  %632 = vmatprep.subr.bf16.mxu0 0
  %633 = vmatpush2.bf16.xpose.msra.mxu0 0
  %634 = vmatprep.subr.bf16.mxu0 0
  %635 = vmatpush2.bf16.xpose.msra.mxu0 0
  %636 = vmatprep.subr.bf16.mxu0 0
  %637 = vmatpush2.bf16.xpose.msra.mxu0 0
  %638 = vmatprep.subr.bf16.mxu0 0
  %639 = vmatpush2.bf16.xpose.msra.mxu0 0
  %640 = vmatprep.mubr.bf16.mxu0 %v607
  %641 = vmatmul.mubr.bf16.gmra.mxu0 %v606
  %v642 = vpop.f32.mrf.mxu0
  %v643 = vadd.f32 %v26, %v642
  %v644 = vpop.f32.mrf.mxu0
  %v645 = vpop.f32.mrf.mxu0
  %v646 = vadd.f32 %v26, %v645
  %v647 = vpop.f32.mrf.mxu0
  %648 = vdwg.mxu0
  %v649 = vadd.f32 %v542, %v643
  %v650 = vadd.f32 %v543, %v646
  %v651 = vsel %vm123, %v649, 0.0
  %652 = vadd.xlane.f32.xlu0 %v651
  %v653 = vpop.xlane.xlu0 %652
  %v654 = vsel %vm123, %v650, 0.0
  %655 = vadd.xlane.f32.xlu0 %v654
  %v656 = vpop.xlane.xlu0 %655
  %v657 = vmul.f32 %v653, %v519
  %v658 = vmul.f32 %v656, %v519
  %v659 = vsub.f32 %v649, %v657
  %v660 = vsub.f32 %v650, %v658
  %v661 = vmul.f32 %v659, %v659
  %v662 = vmul.f32 %v660, %v660
  %v663 = vsel %vm123, %v661, 0.0
  %664 = vadd.xlane.f32.xlu0 %v663
  %v665 = vpop.xlane.xlu0 %664
  %v666 = vsel %vm123, %v662, 0.0
  %667 = vadd.xlane.f32.xlu0 %v666
  %v668 = vpop.xlane.xlu0 %667
  %v669 = vmul.f32 %v665, %v519
  %v670 = vmul.f32 %v668, %v519
  %v671 = vadd.f32 %v669, 1e-05
  %v672 = vadd.f32 %v670, 1e-05
  %v673 = vrsqrt.pop %v671
  %v674 = vrsqrt.pop %v672
  %v675 = vmul.f32 %v659, %v673
  %v676 = vmul.f32 %v660, %v674
  %v677 = vmul.f32 %v675, %v22
  %v678 = vmul.f32 %v676, %v22
  %v679 = vadd.f32 %v677, %v23
  %v680 = vadd.f32 %v678, %v23
  %v681 = vpack.c.bf16 %v16, %v16
  %v682 = vpack.c.bf16 %v680, %v679
  %v684 = vsel %vm172, %v681, 0
  %686 = vmatprep.subr.bf16.mxu0 0
  %687 = vmatpush1.bf16.msra.mxu0 0
  %688 = vmatprep.subr.bf16.mxu0 0
  %689 = vmatpush1.bf16.msra.mxu0 0
  %690 = vmatprep.subr.bf16.mxu0 0
  %691 = vmatpush1.bf16.msra.mxu0 0
  %692 = vmatprep.subr.bf16.mxu0 0
  %693 = vmatpush1.bf16.msra.mxu0 0
  %694 = vmatprep.subr.bf16.mxu0 0
  %695 = vmatpush1.bf16.msra.mxu0 0
  %696 = vmatprep.subr.bf16.mxu0 0
  %697 = vmatpush1.bf16.msra.mxu0 0
  %698 = vmatprep.subr.bf16.mxu0 0
  %699 = vmatpush1.bf16.msra.mxu0 0
  %700 = vmatprep.subr.bf16.mxu0 0
  %701 = vmatpush1.bf16.msra.mxu0 %v682
  %702 = vmatprep.subr.bf16.mxu0 0
  %703 = vmatpush2.bf16.msra.mxu0 0
  %704 = vmatprep.subr.bf16.mxu0 0
  %705 = vmatpush2.bf16.msra.mxu0 0
  %706 = vmatprep.subr.bf16.mxu0 0
  %707 = vmatpush2.bf16.msra.mxu0 0
  %708 = vmatprep.subr.bf16.mxu0 0
  %709 = vmatpush2.bf16.msra.mxu0 0
  %710 = vmatprep.subr.bf16.mxu0 0
  %711 = vmatpush2.bf16.msra.mxu0 0
  %712 = vmatprep.subr.bf16.mxu0 0
  %713 = vmatpush2.bf16.msra.mxu0 0
  %714 = vmatprep.subr.bf16.mxu0 0
  %715 = vmatpush2.bf16.msra.mxu0 0
  %716 = vmatprep.subr.bf16.mxu0 0
  %717 = vmatpush2.bf16.msra.mxu0 0
  %718 = vmatprep.mubr.bf16.mxu0 0
  %719 = vmatmul.mubr.bf16.gmra.mxu0 %v684
  %v720 = vpop.f32.mrf.mxu0
  %v721 = vadd.f32 0.0, %v720
  %v722 = vpop.f32.mrf.mxu0
  %v723 = vpop.f32.mrf.mxu0
  %v724 = vpop.f32.mrf.mxu0
  %725 = vdwg.mxu0
  %v726 = vpack.c.bf16 %v721, %v721
  %v728 = vsel %vm123, %v726, 0
  %730 = vmatprep.subr.bf16.mxu0 0
  %731 = vmatpush1.bf16.msra.mxu0 0
  %732 = vmatprep.subr.bf16.mxu0 0
  %733 = vmatpush1.bf16.msra.mxu0 0
  %734 = vmatprep.subr.bf16.mxu0 0
  %735 = vmatpush1.bf16.msra.mxu0 0
  %736 = vmatprep.subr.bf16.mxu0 0
  %737 = vmatpush1.bf16.msra.mxu0 0
  %738 = vmatprep.subr.bf16.mxu0 0
  %739 = vmatpush1.bf16.msra.mxu0 0
  %740 = vmatprep.subr.bf16.mxu0 0
  %741 = vmatpush1.bf16.msra.mxu0 0
  %742 = vmatprep.subr.bf16.mxu0 0
  %743 = vmatpush1.bf16.msra.mxu0 %v71
  %744 = vmatprep.subr.bf16.mxu0 0
  %745 = vmatpush1.bf16.msra.mxu0 %v70
  %746 = vmatprep.subr.bf16.mxu0 0
  %747 = vmatpush2.bf16.msra.mxu0 0
  %748 = vmatprep.subr.bf16.mxu0 0
  %749 = vmatpush2.bf16.msra.mxu0 0
  %750 = vmatprep.subr.bf16.mxu0 0
  %751 = vmatpush2.bf16.msra.mxu0 0
  %752 = vmatprep.subr.bf16.mxu0 0
  %753 = vmatpush2.bf16.msra.mxu0 0
  %754 = vmatprep.subr.bf16.mxu0 0
  %755 = vmatpush2.bf16.msra.mxu0 0
  %756 = vmatprep.subr.bf16.mxu0 0
  %757 = vmatpush2.bf16.msra.mxu0 0
  %758 = vmatprep.subr.bf16.mxu0 0
  %759 = vmatpush2.bf16.msra.mxu0 0
  %760 = vmatprep.subr.bf16.mxu0 0
  %761 = vmatpush2.bf16.msra.mxu0 0
  %762 = vmatprep.mubr.bf16.mxu0 0
  %763 = vmatmul.mubr.bf16.gmra.mxu0 %v728
  %v764 = vpop.f32.mrf.mxu0
  %v765 = vadd.f32 %v27, %v764
  %v766 = vpop.f32.mrf.mxu0
  %v767 = vpop.f32.mrf.mxu0
  %v768 = vpop.f32.mrf.mxu0
  %769 = vdwg.mxu0
  %770 = vst [vmem:[%s2] sm:$0xff] %v765
  // Predicated region
  $region10: #{transformer_encoder.1} parent=0 // pred_check
    _
  $region11: #{transformer_encoder.1} parent=0 // pred_check_branch
    %772 = sbr.rel (0) target = $region13
  $region12: #{transformer_encoder.1} parent=0 // pred_region
    _
  $region13: #{transformer_encoder.1} parent=0 // pred_fallthru
    _
  // Predicated region
  $region14: #{transformer_encoder.1} parent=0 // pred_check
    _
  $region15: #{transformer_encoder.1} parent=0 // pred_check_branch
    %774 = sbr.rel (0) target = $region17
  $region16: #{transformer_encoder.1} parent=0 // pred_region
    _
  $region17: #{transformer_encoder.1} parent=0 // pred_fallthru
    _

</llo_original>
